<compile_context>
chip_gen: v7x
topology: tpu7x:2x2x1
jax: 0.10.0
libtpu: 0.0.40
codegen_flags: <defaults>
</compile_context>

<pallas_src>
import functools
import math

import jax
import jax.numpy as jnp
from jax import lax
from jax.experimental import pallas as pl
from jax.experimental.pallas import tpu as pltpu


def _round_up(n, m):
    return ((n + m - 1) // m) * m


def _gelu_exact(x):
    # exact (erf-based) GELU, matching torch.nn.functional.gelu default
    return 0.5 * x * (1.0 + lax.erf(x * (1.0 / math.sqrt(2.0))))


def feedforward_kernel(x_ref, w1h_ref, b1h_ref, w1g_ref, b1g_ref, w2_ref, b2_ref,
                       o_ref, *, approximate_gelu: bool):
    # x_ref:   (tm, dpad)     bf16 row-tile of tokens
    # w1h_ref: (dpad, ipad)   bf16 "hidden" half of the GEGLU projection
    # b1h_ref: (1, ipad)      f32
    # w1g_ref: (dpad, ipad)   bf16 "gate" half of the GEGLU projection
    # b1g_ref: (1, ipad)      f32
    # w2_ref:  (ipad, opad)   bf16 output projection
    # b2_ref:  (1, opad)      f32
    x = x_ref[...]  # bf16 operands -> native MXU path, f32 accumulation below

    hidden = jnp.dot(x, w1h_ref[...], preferred_element_type=jnp.float32) + b1h_ref[...]
    gate = jnp.dot(x, w1g_ref[...], preferred_element_type=jnp.float32) + b1g_ref[...]

    if approximate_gelu:
        # tanh-approx GELU runs on the EUP (free VLIW slot); ~1e-3 deviation vs erf.
        act = jax.nn.gelu(gate, approximate=True)
    else:
        act = _gelu_exact(gate)

    # Dropout(p=0.0) is identity -> elided.
    y = (hidden * act).astype(jnp.bfloat16)
    out = jnp.dot(y, w2_ref[...], preferred_element_type=jnp.float32) + b2_ref[...]
    o_ref[...] = out.astype(o_ref.dtype)


def feedforward(x, w1, b1, w2, b2, *, tm=256, approximate_gelu=False):
    """x: [M, dim] float32; w1: [dim, 2*inner]; w2: [inner, dim_out]. Returns [M, dim_out]."""
    M, dim = x.shape
    two_inner = w1.shape[1]
    inner = two_inner // 2
    dim_out = w2.shape[1]

    # Split the GEGLU projection (matches torch's chunk(2, dim=-1)).
    w1h, w1g = w1[:, :inner], w1[:, inner:]
    b1h, b1g = b1[:inner], b1[inner:]

    # Lane-align all feature dims to 128 (zero pad); pad rows to a tile multiple.
    dpad = _round_up(dim, 128)
    ipad = _round_up(inner, 128)
    opad = _round_up(dim_out, 128)
    tm_eff = min(tm, _round_up(M, 8))       # don't over-tile tiny M
    mpad = _round_up(M, tm_eff)

    def pad2(a, r, c):
        return jnp.pad(a, ((0, r - a.shape[0]), (0, c - a.shape[1])))

    xp = pad2(x, mpad, dpad).astype(jnp.bfloat16)
    w1h_p = pad2(w1h, dpad, ipad).astype(jnp.bfloat16)
    w1g_p = pad2(w1g, dpad, ipad).astype(jnp.bfloat16)
    w2_p = pad2(w2, ipad, opad).astype(jnp.bfloat16)
    b1h_p = jnp.pad(b1h, (0, ipad - inner)).reshape(1, ipad).astype(jnp.float32)
    b1g_p = jnp.pad(b1g, (0, ipad - inner)).reshape(1, ipad).astype(jnp.float32)
    b2_p = jnp.pad(b2, (0, opad - dim_out)).reshape(1, opad).astype(jnp.float32)

    kernel = functools.partial(feedforward_kernel, approximate_gelu=approximate_gelu)

    out = pl.pallas_call(
        kernel,
        out_shape=jax.ShapeDtypeStruct((mpad, opad), x.dtype),
        grid_spec=pltpu.PrefetchScalarGridSpec(
            num_scalar_prefetch=0,
            grid=(mpad // tm_eff,),
            in_specs=[
                pl.BlockSpec((tm_eff, dpad), lambda i: (i, 0)),
                pl.BlockSpec((dpad, ipad), lambda i: (0, 0)),
                pl.BlockSpec((1, ipad), lambda i: (0, 0)),
                pl.BlockSpec((dpad, ipad), lambda i: (0, 0)),
                pl.BlockSpec((1, ipad), lambda i: (0, 0)),
                pl.BlockSpec((ipad, opad), lambda i: (0, 0)),
                pl.BlockSpec((1, opad), lambda i: (0, 0)),
            ],
            out_specs=pl.BlockSpec((tm_eff, opad), lambda i: (i, 0)),
        ),
        compiler_params=pltpu.CompilerParams(
            dimension_semantics=("parallel",),
        ),
    )(xp, w1h_p, b1h_p, w1g_p, b1g_p, w2_p, b2_p)

    return out[:M, :dim_out]


def feedforward_ref_f32(x, w1, b1, w2, b2):
    """Pure-f32 reference matching the torch module exactly."""
    h = x @ w1 + b1
    inner = h.shape[-1] // 2
    hidden, gate = h[:, :inner], h[:, inner:]
    y = hidden * _gelu_exact(gate)
    return y @ w2 + b2


def feedforward_ref_bf16(x, w1, b1, w2, b2):
    """Reference mirroring the kernel's bf16-operand / f32-accumulate arithmetic."""
    inner = w1.shape[1] // 2
    xb = x.astype(jnp.bfloat16)
    w1h = w1[:, :inner].astype(jnp.bfloat16)
    w1g = w1[:, inner:].astype(jnp.bfloat16)
    hidden = jnp.dot(xb, w1h, preferred_element_type=jnp.float32) + b1[:inner]
    gate = jnp.dot(xb, w1g, preferred_element_type=jnp.float32) + b1[inner:]
    y = (hidden * _gelu_exact(gate)).astype(jnp.bfloat16)
    return jnp.dot(y, w2.astype(jnp.bfloat16), preferred_element_type=jnp.float32) + b2


if __name__ == "__main__":
    # Module config: dim=32, mult=4 -> inner_dim=128, dim_out=dim=32,
    # activation_fn='geglu', bias=True, dropout=0.0, final_dropout=False.
    batch, seq, dim = 2, 8, 32
    mult = 4
    inner_dim = dim * mult
    dim_out = dim

    key = jax.random.PRNGKey(0)
    k_x, k_w1, k_b1, k_w2, k_b2 = jax.random.split(key, 5)

    # hidden_states: [batch, seq, dim]
    x = jax.random.normal(k_x, (batch, seq, dim), dtype=jnp.float32)

    # GEGLU proj: Linear(dim, inner_dim * 2); stored as [in, out]
    w1 = jax.random.normal(k_w1, (dim, 2 * inner_dim), dtype=jnp.float32) * 0.05
    b1 = jax.random.normal(k_b1, (2 * inner_dim,), dtype=jnp.float32) * 0.05
    # output Linear(inner_dim, dim_out); stored as [in, out]
    w2 = jax.random.normal(k_w2, (inner_dim, dim_out), dtype=jnp.float32) * 0.05
    b2 = jax.random.normal(k_b2, (dim_out,), dtype=jnp.float32) * 0.05

    x2d = x.reshape(batch * seq, dim)
    out2d = feedforward(x2d, w1, b1, w2, b2)
    out = out2d.reshape(batch, seq, dim_out)
    jax.block_until_ready(out)

    # Exact check against a reference that mirrors the kernel's bf16/f32 arithmetic.
    ref_bf16 = feedforward_ref_bf16(x2d, w1, b1, w2, b2).reshape(batch, seq, dim_out)
    assert jnp.allclose(out, ref_bf16, atol=1e-4, rtol=1e-4), "mismatch vs bf16 reference"

    # Loose check against the pure-f32 torch-equivalent reference (bf16 operand rounding).
    ref_f32 = feedforward_ref_f32(x2d, w1, b1, w2, b2).reshape(batch, seq, dim_out)
    assert jnp.allclose(out, ref_f32, atol=2e-2, rtol=2e-2), "mismatch vs f32 reference"

    print("KERNEL_OK")
</pallas_src>

<mosaic_0001>
module attributes {stable_mosaic.version = 11 : i64} {
  func.func @feedforward_kernel(%arg0: i32, %arg1: memref<16x128xbf16, #tpu.memory_space<vmem>>, %arg2: memref<128x128xbf16, #tpu.memory_space<vmem>>, %arg3: memref<1x128xf32, #tpu.memory_space<vmem>>, %arg4: memref<128x128xbf16, #tpu.memory_space<vmem>>, %arg5: memref<1x128xf32, #tpu.memory_space<vmem>>, %arg6: memref<128x128xbf16, #tpu.memory_space<vmem>>, %arg7: memref<1x128xf32, #tpu.memory_space<vmem>>, %arg8: memref<16x128xf32, #tpu.memory_space<vmem>>) attributes {dimension_semantics = [#tpu.dimension_semantics<parallel>], iteration_bounds = array<i64: 1>, scalar_prefetch = 0 : i64, scratch_operands = 0 : i64, tpu.core_type = #tpu.core_type<tc>, window_params = [{transform_indices = @transform_0, window_bounds = array<i64: 16, 128>}, {pipeline_mode = #tpu.pipeline_mode<synchronous>, transform_indices = @transform_1, window_bounds = array<i64: 128, 128>}, {pipeline_mode = #tpu.pipeline_mode<synchronous>, transform_indices = @transform_2, window_bounds = array<i64: 1, 128>}, {pipeline_mode = #tpu.pipeline_mode<synchronous>, transform_indices = @transform_3, window_bounds = array<i64: 128, 128>}, {pipeline_mode = #tpu.pipeline_mode<synchronous>, transform_indices = @transform_4, window_bounds = array<i64: 1, 128>}, {pipeline_mode = #tpu.pipeline_mode<synchronous>, transform_indices = @transform_5, window_bounds = array<i64: 128, 128>}, {pipeline_mode = #tpu.pipeline_mode<synchronous>, transform_indices = @transform_6, window_bounds = array<i64: 1, 128>}, {transform_indices = @transform_7, window_bounds = array<i64: 16, 128>}]} {
    %c0 = arith.constant 0 : index
    %c0_0 = arith.constant 0 : index
    %0 = vector.load %arg1[%c0, %c0_0] : memref<16x128xbf16, #tpu.memory_space<vmem>>, vector<16x128xbf16>
    %c0_1 = arith.constant 0 : index
    %c0_2 = arith.constant 0 : index
    %1 = vector.load %arg2[%c0_1, %c0_2] : memref<128x128xbf16, #tpu.memory_space<vmem>>, vector<128x128xbf16>
    %cst = arith.constant dense<0.000000e+00> : vector<16x128xf32>
    %2 = tpu.matmul %0, %1, %cst {dimension_numbers = #tpu.dot_dimension_numbers<[1], [0], [0], [1], [0, 0, 1, 1], [], []>} : vector<16x128xbf16>, vector<128x128xbf16>, vector<16x128xf32> -> vector<16x128xf32>
    %c0_3 = arith.constant 0 : index
    %c0_4 = arith.constant 0 : index
    %3 = vector.load %arg3[%c0_3, %c0_4] : memref<1x128xf32, #tpu.memory_space<vmem>>, vector<1x128xf32>
    %4 = vector.broadcast %3 : vector<1x128xf32> to vector<16x128xf32>
    %5 = arith.addf %2, %4 : vector<16x128xf32>
    %c0_5 = arith.constant 0 : index
    %c0_6 = arith.constant 0 : index
    %6 = vector.load %arg4[%c0_5, %c0_6] : memref<128x128xbf16, #tpu.memory_space<vmem>>, vector<128x128xbf16>
    %cst_7 = arith.constant dense<0.000000e+00> : vector<16x128xf32>
    %7 = tpu.matmul %0, %6, %cst_7 {dimension_numbers = #tpu.dot_dimension_numbers<[1], [0], [0], [1], [0, 0, 1, 1], [], []>} : vector<16x128xbf16>, vector<128x128xbf16>, vector<16x128xf32> -> vector<16x128xf32>
    %c0_8 = arith.constant 0 : index
    %c0_9 = arith.constant 0 : index
    %8 = vector.load %arg5[%c0_8, %c0_9] : memref<1x128xf32, #tpu.memory_space<vmem>>, vector<1x128xf32>
    %9 = vector.broadcast %8 : vector<1x128xf32> to vector<16x128xf32>
    %10 = arith.addf %7, %9 : vector<16x128xf32>
    %cst_10 = arith.constant 5.000000e-01 : f32
    %11 = vector.broadcast %cst_10 : f32 to vector<16x128xf32>
    %12 = arith.mulf %11, %10 : vector<16x128xf32>
    %cst_11 = arith.constant 0.707106769 : f32
    %13 = vector.broadcast %cst_11 : f32 to vector<16x128xf32>
    %14 = arith.mulf %10, %13 : vector<16x128xf32>
    %15 = math.erf %14 : vector<16x128xf32>
    %cst_12 = arith.constant 1.000000e+00 : f32
    %16 = vector.broadcast %cst_12 : f32 to vector<16x128xf32>
    %17 = arith.addf %16, %15 : vector<16x128xf32>
    %18 = arith.mulf %12, %17 : vector<16x128xf32>
    %19 = arith.mulf %5, %18 : vector<16x128xf32>
    %20 = arith.truncf %19 : vector<16x128xf32> to vector<16x128xbf16>
    %c0_13 = arith.constant 0 : index
    %c0_14 = arith.constant 0 : index
    %21 = vector.load %arg6[%c0_13, %c0_14] : memref<128x128xbf16, #tpu.memory_space<vmem>>, vector<128x128xbf16>
    %cst_15 = arith.constant dense<0.000000e+00> : vector<16x128xf32>
    %22 = tpu.matmul %20, %21, %cst_15 {dimension_numbers = #tpu.dot_dimension_numbers<[1], [0], [0], [1], [0, 0, 1, 1], [], []>} : vector<16x128xbf16>, vector<128x128xbf16>, vector<16x128xf32> -> vector<16x128xf32>
    %c0_16 = arith.constant 0 : index
    %c0_17 = arith.constant 0 : index
    %23 = vector.load %arg7[%c0_16, %c0_17] : memref<1x128xf32, #tpu.memory_space<vmem>>, vector<1x128xf32>
    %24 = vector.broadcast %23 : vector<1x128xf32> to vector<16x128xf32>
    %25 = arith.addf %22, %24 : vector<16x128xf32>
    %c0_18 = arith.constant 0 : index
    %c0_19 = arith.constant 0 : index
    %26 = vector.load %arg8[%c0_18, %c0_19] : memref<16x128xf32, #tpu.memory_space<vmem>>, vector<16x128xf32>
    tpu.vector_store %arg8[%c0_18, %c0_19], %25 {strides = array<i32>} : memref<16x128xf32, #tpu.memory_space<vmem>>, vector<16x128xf32>,
    return
  }
  func.func @transform_0(%arg0: i32) -> (i32, i32) {
    %c0_i32 = arith.constant 0 : i32
    %c0_i32_0 = arith.constant 0 : i32
    return %arg0, %c0_i32 : i32, i32
  }
  func.func @transform_1(%arg0: i32) -> (i32, i32) {
    %c0_i32 = arith.constant 0 : i32
    %c0_i32_0 = arith.constant 0 : i32
    %c0_i32_1 = arith.constant 0 : i32
    return %c0_i32, %c0_i32_0 : i32, i32
  }
  func.func @transform_2(%arg0: i32) -> (i32, i32) {
    %c0_i32 = arith.constant 0 : i32
    %c0_i32_0 = arith.constant 0 : i32
    %c0_i32_1 = arith.constant 0 : i32
    return %c0_i32, %c0_i32_0 : i32, i32
  }
  func.func @transform_3(%arg0: i32) -> (i32, i32) {
    %c0_i32 = arith.constant 0 : i32
    %c0_i32_0 = arith.constant 0 : i32
    %c0_i32_1 = arith.constant 0 : i32
    return %c0_i32, %c0_i32_0 : i32, i32
  }
  func.func @transform_4(%arg0: i32) -> (i32, i32) {
    %c0_i32 = arith.constant 0 : i32
    %c0_i32_0 = arith.constant 0 : i32
    %c0_i32_1 = arith.constant 0 : i32
    return %c0_i32, %c0_i32_0 : i32, i32
  }
  func.func @transform_5(%arg0: i32) -> (i32, i32) {
    %c0_i32 = arith.constant 0 : i32
    %c0_i32_0 = arith.constant 0 : i32
    %c0_i32_1 = arith.constant 0 : i32
    return %c0_i32, %c0_i32_0 : i32, i32
  }
  func.func @transform_6(%arg0: i32) -> (i32, i32) {
    %c0_i32 = arith.constant 0 : i32
    %c0_i32_0 = arith.constant 0 : i32
    %c0_i32_1 = arith.constant 0 : i32
    return %c0_i32, %c0_i32_0 : i32, i32
  }
  func.func @transform_7(%arg0: i32) -> (i32, i32) {
    %c0_i32 = arith.constant 0 : i32
    %c0_i32_0 = arith.constant 0 : i32
    return %arg0, %c0_i32 : i32, i32
  }
}

</mosaic_0001>

<llo_original>
// kernel: tpu_custom_call.1
$region0: #{tpu_custom_call.1}
  #allocation0 [shape = 'u32[]', space=smem, size = 0x4, offset = 0x4, fixed_abs, tag = 'smem constant byte address 0x4 - core index']
  #allocation1 [shape = 'u32[144,128]{1,0:T(1,128)}', space=vmem, size = 0x12000, scoped, tag = 'internal scratch']
  %s0 = inlined_call_operand.hbm [shape: bf16[16,128], index: 0, kind: input, shape index: {}]
  %s1 = inlined_call_operand.hbm [shape: bf16[128,128], index: 1, kind: input, shape index: {}]
  %s2 = inlined_call_operand.vmem [shape: f32[1,128], index: 2, kind: input, shape index: {}]
  %s3 = inlined_call_operand.hbm [shape: bf16[128,128], index: 3, kind: input, shape index: {}]
  %s4 = inlined_call_operand.vmem [shape: f32[1,128], index: 4, kind: input, shape index: {}]
  %s5 = inlined_call_operand.hbm [shape: bf16[128,128], index: 5, kind: input, shape index: {}]
  %s6 = inlined_call_operand.vmem [shape: f32[1,128], index: 6, kind: input, shape index: {}]
  %s7 = inlined_call_operand.hbm [shape: f32[16,128], index: 7, kind: output, shape index: {}]
  %s8 = sld [smem:[#allocation0]]
  $region54: #{tpu_custom_call.1} parent=0
    _
  %s10 = ssub.s32 1, %s8
  %s11 = scalar_select 0, %s10, %s8
  $region1: #{tpu_custom_call.1} parent=0
    #allocation2 [shape = 'u8[4096]{0}', space=vmem, size = 0x1000, scoped, tag = 'input window, operand 0, single buffered']
    #allocation3 [shape = 's32[1]{0}', space=sflag, size = 0x4, scoped, tag = 'scoped memory for tpu_custom_call.1']
    #allocation4 [shape = 's32[1]{0}', space=sflag, size = 0x4, scoped, tag = 'scoped memory for tpu_custom_call.1']
    #allocation5 [shape = 'u8[32768]{0}', space=vmem, size = 0x8000, scoped, tag = 'input window, operand 1, single buffered']
    #allocation6 [shape = 's32[1]{0}', space=sflag, size = 0x4, scoped, tag = 'scoped memory for tpu_custom_call.1']
    #allocation7 [shape = 'u8[32768]{0}', space=vmem, size = 0x8000, scoped, tag = 'input window, operand 3, single buffered']
    #allocation8 [shape = 'u8[32768]{0}', space=vmem, size = 0x8000, scoped, tag = 'input window, operand 5, single buffered']
    #allocation9 [shape = 's32[1]{0}', space=sflag, size = 0x4, scoped, tag = 'scoped memory for tpu_custom_call.1']
    #allocation10 [shape = 'u8[8192]{0}', space=vmem, size = 0x2000, scoped, tag = 'output window, operand 0, single buffered']
    %12 = vsyncpa [#allocation3], 0
    %13 = vsyncpa [#allocation6], 0
    %14 = vsyncpa [#allocation9], 0
    %15 = vsyncpa [#allocation4], 0
    // Predicated region
    $region2: #{tpu_custom_call.1} parent=1 // pred_check
      _
    $region3: #{tpu_custom_call.1} parent=1 // pred_check_branch
      %17 = sbr.rel (0) target = $region5
    $region4: #{tpu_custom_call.1} parent=1 // pred_region
      %s19 = ssub.s32 128, 128
      %20 = vsyncadd [#allocation3], %s19
      %s21 = sshll.u32 [#allocation2], 4
      %s22 = int_to_ptr.vmem [resolvable:$true] %s21
      %27 = dma.hbm_to_vmem [thread:$0]  %s0, 128, %s22, [#allocation3], 64, 64, 4
    $region5: #{tpu_custom_call.1} parent=1 // pred_fallthru
      _
    // Predicated region
    $region6: #{tpu_custom_call.1} parent=1 // pred_check
      _
    $region7: #{tpu_custom_call.1} parent=1 // pred_check_branch
      %29 = sbr.rel (0) target = $region9
    $region8: #{tpu_custom_call.1} parent=1 // pred_region
      %s31 = ssub.s32 1024, 1024
      %32 = vsyncadd [#allocation6], %s31
      %s33 = sshll.u32 [#allocation5], 4
      %s34 = int_to_ptr.vmem [resolvable:$true] %s33
      %39 = dma.hbm_to_vmem [thread:$0]  %s1, 1024, %s34, [#allocation6], 64, 64, 4
    $region9: #{tpu_custom_call.1} parent=1 // pred_fallthru
      _
    // Predicated region
    $region10: #{tpu_custom_call.1} parent=1 // pred_check
      _
    $region11: #{tpu_custom_call.1} parent=1 // pred_check_branch
      %41 = sbr.rel (0) target = $region13
    $region12: #{tpu_custom_call.1} parent=1 // pred_region
      _
    $region13: #{tpu_custom_call.1} parent=1 // pred_fallthru
      _
    // Predicated region
    $region14: #{tpu_custom_call.1} parent=1 // pred_check
      _
    $region15: #{tpu_custom_call.1} parent=1 // pred_check_branch
      %43 = sbr.rel (0) target = $region17
    $region16: #{tpu_custom_call.1} parent=1 // pred_region
      %s45 = ssub.s32 1024, 1024
      %46 = vsyncadd [#allocation6], %s45
      %s47 = sshll.u32 [#allocation7], 4
      %s48 = int_to_ptr.vmem [resolvable:$true] %s47
      %53 = dma.hbm_to_vmem [thread:$0]  %s3, 1024, %s48, [#allocation6], 64, 64, 4
    $region17: #{tpu_custom_call.1} parent=1 // pred_fallthru
      _
    // Predicated region
    $region18: #{tpu_custom_call.1} parent=1 // pred_check
      _
    $region19: #{tpu_custom_call.1} parent=1 // pred_check_branch
      %55 = sbr.rel (0) target = $region21
    $region20: #{tpu_custom_call.1} parent=1 // pred_region
      _
    $region21: #{tpu_custom_call.1} parent=1 // pred_fallthru
      _
    // Predicated region
    $region22: #{tpu_custom_call.1} parent=1 // pred_check
      _
    $region23: #{tpu_custom_call.1} parent=1 // pred_check_branch
      %57 = sbr.rel (0) target = $region25
    $region24: #{tpu_custom_call.1} parent=1 // pred_region
      %s59 = ssub.s32 1024, 1024
      %60 = vsyncadd [#allocation9], %s59
      %s61 = sshll.u32 [#allocation8], 4
      %s62 = int_to_ptr.vmem [resolvable:$true] %s61
      %67 = dma.hbm_to_vmem [thread:$0]  %s5, 1024, %s62, [#allocation9], 64, 64, 4
    $region25: #{tpu_custom_call.1} parent=1 // pred_fallthru
      _
    // Predicated region
    $region26: #{tpu_custom_call.1} parent=1 // pred_check
      _
    $region27: #{tpu_custom_call.1} parent=1 // pred_check_branch
      %69 = sbr.rel (0) target = $region29
    $region28: #{tpu_custom_call.1} parent=1 // pred_region
      _
    $region29: #{tpu_custom_call.1} parent=1 // pred_fallthru
      _
    // Predicated region
    $region30: #{tpu_custom_call.1} parent=1 // pred_check
      _
    $region31: #{tpu_custom_call.1} parent=1 // pred_check_branch
      %71 = sbr.rel (0) target = $region33
    $region32: #{tpu_custom_call.1} parent=1 // pred_region
      %72 = dma.done [#allocation3], 128
    $region33: #{tpu_custom_call.1} parent=1 // pred_fallthru
      _
    // Predicated region
    $region34: #{tpu_custom_call.1} parent=1 // pred_check
      _
    $region35: #{tpu_custom_call.1} parent=1 // pred_check_branch
      %74 = sbr.rel (0) target = $region37
    $region36: #{tpu_custom_call.1} parent=1 // pred_region
      %75 = dma.done [#allocation6], 1024
    $region37: #{tpu_custom_call.1} parent=1 // pred_fallthru
      _
    // Predicated region
    $region38: #{tpu_custom_call.1} parent=1 // pred_check
      _
    $region39: #{tpu_custom_call.1} parent=1 // pred_check_branch
      %77 = sbr.rel (0) target = $region41
    $region40: #{tpu_custom_call.1} parent=1 // pred_region
      %78 = dma.done [#allocation6], 1024
    $region41: #{tpu_custom_call.1} parent=1 // pred_fallthru
      _
    // Predicated region
    $region42: #{tpu_custom_call.1} parent=1 // pred_check
      _
    $region43: #{tpu_custom_call.1} parent=1 // pred_check_branch
      %80 = sbr.rel (0) target = $region45
    $region44: #{tpu_custom_call.1} parent=1 // pred_region
      %81 = dma.done [#allocation9], 1024
    $region45: #{tpu_custom_call.1} parent=1 // pred_fallthru
      _
    %v83 = vld [vmem:[#allocation2] sm:$0xf]
    %v84 = vld [vmem:[#allocation2 + $0x4] sm:$0xf]
    %v85 = vld [vmem:[#allocation5] sm:$0xf]
    %v86 = vld [vmem:[#allocation5 + $0x4] sm:$0xf]
    %v87 = vld [vmem:[#allocation5 + $0x8] sm:$0xf]
    %v88 = vld [vmem:[#allocation5 + $0xc] sm:$0xf]
    %v89 = vld [vmem:[#allocation5 + $0x10] sm:$0xf]
    %v90 = vld [vmem:[#allocation5 + $0x14] sm:$0xf]
    %v91 = vld [vmem:[#allocation5 + $0x18] sm:$0xf]
    %v92 = vld [vmem:[#allocation5 + $0x1c] sm:$0xf]
    %v93 = vld [vmem:[#allocation5 + $0x20] sm:$0xf]
    %v94 = vld [vmem:[#allocation5 + $0x24] sm:$0xf]
    %v95 = vld [vmem:[#allocation5 + $0x28] sm:$0xf]
    %v96 = vld [vmem:[#allocation5 + $0x2c] sm:$0xf]
    %v97 = vld [vmem:[#allocation5 + $0x30] sm:$0xf]
    %v98 = vld [vmem:[#allocation5 + $0x34] sm:$0xf]
    %v99 = vld [vmem:[#allocation5 + $0x38] sm:$0xf]
    %v100 = vld [vmem:[#allocation5 + $0x3c] sm:$0xf]
    %v101 = vld [vmem:[%s2] sm:$0x1]
    %v103 = vlaneseq
    %v104 = vshrl.u32 %v103, 7
    %v105 = vsub.s32 0, %v104
    %v106 = vrot.slane %v101, %v105
    %v110 = vunpack.c.l.b16 %v83
    %v111 = vunpack.c.l.b16 %v84
    %v112 = vpack.c.b16 %v111, %v110
    %v130 = vunpack.c.l.b16 %v85
    %v131 = vunpack.c.l.b16 %v86
    %v132 = vunpack.c.l.b16 %v87
    %v133 = vunpack.c.l.b16 %v88
    %v134 = vunpack.c.l.b16 %v89
    %v135 = vunpack.c.l.b16 %v90
    %v136 = vunpack.c.l.b16 %v91
    %v137 = vunpack.c.l.b16 %v92
    %v138 = vunpack.c.l.b16 %v93
    %v139 = vunpack.c.l.b16 %v94
    %v140 = vunpack.c.l.b16 %v95
    %v141 = vunpack.c.l.b16 %v96
    %v142 = vunpack.c.l.b16 %v97
    %v143 = vunpack.c.l.b16 %v98
    %v144 = vunpack.c.l.b16 %v99
    %v145 = vunpack.c.l.b16 %v100
    %v146 = vpack.c.b16 %v131, %v130
    %v147 = vpack.c.b16 %v133, %v132
    %v148 = vpack.c.b16 %v135, %v134
    %v149 = vpack.c.b16 %v137, %v136
    %v150 = vpack.c.b16 %v139, %v138
    %v151 = vpack.c.b16 %v141, %v140
    %v152 = vpack.c.b16 %v143, %v142
    %v153 = vpack.c.b16 %v145, %v144
    %162 = vmatprep.subr.bf16.mxu0 0
    %163 = vmatpush1.bf16.msra.mxu0 %v146
    %164 = vmatprep.subr.bf16.mxu0 0
    %165 = vmatpush1.bf16.msra.mxu0 %v147
    %166 = vmatprep.subr.bf16.mxu0 0
    %167 = vmatpush1.bf16.msra.mxu0 %v148
    %168 = vmatprep.subr.bf16.mxu0 0
    %169 = vmatpush1.bf16.msra.mxu0 %v149
    %170 = vmatprep.subr.bf16.mxu0 0
    %171 = vmatpush1.bf16.msra.mxu0 %v150
    %172 = vmatprep.subr.bf16.mxu0 0
    %173 = vmatpush1.bf16.msra.mxu0 %v151
    %174 = vmatprep.subr.bf16.mxu0 0
    %175 = vmatpush1.bf16.msra.mxu0 %v152
    %176 = vmatprep.subr.bf16.mxu0 0
    %177 = vmatpush1.bf16.msra.mxu0 %v153
    %178 = vmatprep.subr.bf16.mxu0 0
    %179 = vmatpush1.bf16.msra.mxu0 0
    %180 = vmatprep.subr.bf16.mxu0 0
    %181 = vmatpush1.bf16.msra.mxu0 0
    %182 = vmatprep.subr.bf16.mxu0 0
    %183 = vmatpush1.bf16.msra.mxu0 0
    %184 = vmatprep.subr.bf16.mxu0 0
    %185 = vmatpush1.bf16.msra.mxu0 0
    %186 = vmatprep.subr.bf16.mxu0 0
    %187 = vmatpush1.bf16.msra.mxu0 0
    %188 = vmatprep.subr.bf16.mxu0 0
    %189 = vmatpush1.bf16.msra.mxu0 0
    %190 = vmatprep.subr.bf16.mxu0 0
    %191 = vmatpush1.bf16.msra.mxu0 0
    %192 = vmatprep.subr.bf16.mxu0 0
    %193 = vmatpush1.bf16.msra.mxu0 0
    %194 = vmatprep.mubr.bf16.mxu0 0
    %195 = vmatmul.mubr.bf16.gmra.mrb[0].mxu0 %v112
    %v196 = vpop.f32.mrb[0].mxu0
    %v197 = vadd.f32 %v106, %v196
    %v198 = vpop.f32.mrb[0].mxu0
    %v199 = vpop.f32.mrb[0].mxu0
    %v200 = vadd.f32 %v106, %v199
    %v201 = vpop.f32.mrb[0].mxu0
    %202 = vdwg.mxu0
    %v203 = vld [vmem:[#allocation7] sm:$0xf]
    %v204 = vld [vmem:[#allocation7 + $0x4] sm:$0xf]
    %v205 = vld [vmem:[#allocation7 + $0x8] sm:$0xf]
    %v206 = vld [vmem:[#allocation7 + $0xc] sm:$0xf]
    %v207 = vld [vmem:[#allocation7 + $0x10] sm:$0xf]
    %v208 = vld [vmem:[#allocation7 + $0x14] sm:$0xf]
    %v209 = vld [vmem:[#allocation7 + $0x18] sm:$0xf]
    %v210 = vld [vmem:[#allocation7 + $0x1c] sm:$0xf]
    %v211 = vld [vmem:[#allocation7 + $0x20] sm:$0xf]
    %v212 = vld [vmem:[#allocation7 + $0x24] sm:$0xf]
    %v213 = vld [vmem:[#allocation7 + $0x28] sm:$0xf]
    %v214 = vld [vmem:[#allocation7 + $0x2c] sm:$0xf]
    %v215 = vld [vmem:[#allocation7 + $0x30] sm:$0xf]
    %v216 = vld [vmem:[#allocation7 + $0x34] sm:$0xf]
    %v217 = vld [vmem:[#allocation7 + $0x38] sm:$0xf]
    %v218 = vld [vmem:[#allocation7 + $0x3c] sm:$0xf]
    %v219 = vld [vmem:[%s4] sm:$0x1]
    %v221 = vlaneseq
    %v222 = vshrl.u32 %v221, 7
    %v223 = vsub.s32 0, %v222
    %v224 = vrot.slane %v219, %v223
    %v242 = vunpack.c.l.b16 %v203
    %v243 = vunpack.c.l.b16 %v204
    %v244 = vunpack.c.l.b16 %v205
    %v245 = vunpack.c.l.b16 %v206
    %v246 = vunpack.c.l.b16 %v207
    %v247 = vunpack.c.l.b16 %v208
    %v248 = vunpack.c.l.b16 %v209
    %v249 = vunpack.c.l.b16 %v210
    %v250 = vunpack.c.l.b16 %v211
    %v251 = vunpack.c.l.b16 %v212
    %v252 = vunpack.c.l.b16 %v213
    %v253 = vunpack.c.l.b16 %v214
    %v254 = vunpack.c.l.b16 %v215
    %v255 = vunpack.c.l.b16 %v216
    %v256 = vunpack.c.l.b16 %v217
    %v257 = vunpack.c.l.b16 %v218
    %v258 = vpack.c.b16 %v243, %v242
    %v259 = vpack.c.b16 %v245, %v244
    %v260 = vpack.c.b16 %v247, %v246
    %v261 = vpack.c.b16 %v249, %v248
    %v262 = vpack.c.b16 %v251, %v250
    %v263 = vpack.c.b16 %v253, %v252
    %v264 = vpack.c.b16 %v255, %v254
    %v265 = vpack.c.b16 %v257, %v256
    %274 = vmatprep.subr.bf16.mxu0 0
    %275 = vmatpush1.bf16.msra.mxu0 %v258
    %276 = vmatprep.subr.bf16.mxu0 0
    %277 = vmatpush1.bf16.msra.mxu0 %v259
    %278 = vmatprep.subr.bf16.mxu0 0
    %279 = vmatpush1.bf16.msra.mxu0 %v260
    %280 = vmatprep.subr.bf16.mxu0 0
    %281 = vmatpush1.bf16.msra.mxu0 %v261
    %282 = vmatprep.subr.bf16.mxu0 0
    %283 = vmatpush1.bf16.msra.mxu0 %v262
    %284 = vmatprep.subr.bf16.mxu0 0
    %285 = vmatpush1.bf16.msra.mxu0 %v263
    %286 = vmatprep.subr.bf16.mxu0 0
    %287 = vmatpush1.bf16.msra.mxu0 %v264
    %288 = vmatprep.subr.bf16.mxu0 0
    %289 = vmatpush1.bf16.msra.mxu0 %v265
    %290 = vmatprep.subr.bf16.mxu0 0
    %291 = vmatpush1.bf16.msra.mxu0 0
    %292 = vmatprep.subr.bf16.mxu0 0
    %293 = vmatpush1.bf16.msra.mxu0 0
    %294 = vmatprep.subr.bf16.mxu0 0
    %295 = vmatpush1.bf16.msra.mxu0 0
    %296 = vmatprep.subr.bf16.mxu0 0
    %297 = vmatpush1.bf16.msra.mxu0 0
    %298 = vmatprep.subr.bf16.mxu0 0
    %299 = vmatpush1.bf16.msra.mxu0 0
    %300 = vmatprep.subr.bf16.mxu0 0
    %301 = vmatpush1.bf16.msra.mxu0 0
    %302 = vmatprep.subr.bf16.mxu0 0
    %303 = vmatpush1.bf16.msra.mxu0 0
    %304 = vmatprep.subr.bf16.mxu0 0
    %305 = vmatpush1.bf16.msra.mxu0 0
    %306 = vmatprep.mubr.bf16.mxu0 0
    %307 = vmatmul.mubr.bf16.gmra.mrb[0].mxu0 %v112
    %v308 = vpop.f32.mrb[0].mxu0
    %v309 = vadd.f32 %v224, %v308
    %v310 = vpop.f32.mrb[0].mxu0
    %v311 = vpop.f32.mrb[0].mxu0
    %v312 = vadd.f32 %v224, %v311
    %v313 = vpop.f32.mrb[0].mxu0
    %314 = vdwg.mxu0
    %v315 = vmul.f32 %v309, 0.5
    %v316 = vmul.f32 %v312, 0.5
    %v317 = vmul.f32 %v309, 0.70710677
    %v318 = vmul.f32 %v312, 0.70710677
    %v319 = verf.f32.pop %v317
    %v320 = verf.f32.pop %v318
    %v321 = vadd.f32 %v319, 1.0
    %v322 = vadd.f32 %v320, 1.0
    %v323 = vmul.f32 %v315, %v321
    %v324 = vmul.f32 %v316, %v322
    %v325 = vmul.f32 %v197, %v323
    %v326 = vmul.f32 %v200, %v324
    %v327 = vpack.c.bf16 %v326, %v325
    %v328 = vld [vmem:[#allocation8] sm:$0xf]
    %v329 = vld [vmem:[#allocation8 + $0x4] sm:$0xf]
    %v330 = vld [vmem:[#allocation8 + $0x8] sm:$0xf]
    %v331 = vld [vmem:[#allocation8 + $0xc] sm:$0xf]
    %v332 = vld [vmem:[#allocation8 + $0x10] sm:$0xf]
    %v333 = vld [vmem:[#allocation8 + $0x14] sm:$0xf]
    %v334 = vld [vmem:[#allocation8 + $0x18] sm:$0xf]
    %v335 = vld [vmem:[#allocation8 + $0x1c] sm:$0xf]
    %v336 = vld [vmem:[#allocation8 + $0x20] sm:$0xf]
    %v337 = vld [vmem:[#allocation8 + $0x24] sm:$0xf]
    %v338 = vld [vmem:[#allocation8 + $0x28] sm:$0xf]
    %v339 = vld [vmem:[#allocation8 + $0x2c] sm:$0xf]
    %v340 = vld [vmem:[#allocation8 + $0x30] sm:$0xf]
    %v341 = vld [vmem:[#allocation8 + $0x34] sm:$0xf]
    %v342 = vld [vmem:[#allocation8 + $0x38] sm:$0xf]
    %v343 = vld [vmem:[#allocation8 + $0x3c] sm:$0xf]
    %v344 = vld [vmem:[%s6] sm:$0x1]
    %v346 = vlaneseq
    %v347 = vshrl.u32 %v346, 7
    %v348 = vsub.s32 0, %v347
    %v349 = vrot.slane %v344, %v348
    %v367 = vunpack.c.l.b16 %v328
    %v368 = vunpack.c.l.b16 %v329
    %v369 = vunpack.c.l.b16 %v330
    %v370 = vunpack.c.l.b16 %v331
    %v371 = vunpack.c.l.b16 %v332
    %v372 = vunpack.c.l.b16 %v333
    %v373 = vunpack.c.l.b16 %v334
    %v374 = vunpack.c.l.b16 %v335
    %v375 = vunpack.c.l.b16 %v336
    %v376 = vunpack.c.l.b16 %v337
    %v377 = vunpack.c.l.b16 %v338
    %v378 = vunpack.c.l.b16 %v339
    %v379 = vunpack.c.l.b16 %v340
    %v380 = vunpack.c.l.b16 %v341
    %v381 = vunpack.c.l.b16 %v342
    %v382 = vunpack.c.l.b16 %v343
    %v383 = vpack.c.b16 %v368, %v367
    %v384 = vpack.c.b16 %v370, %v369
    %v385 = vpack.c.b16 %v372, %v371
    %v386 = vpack.c.b16 %v374, %v373
    %v387 = vpack.c.b16 %v376, %v375
    %v388 = vpack.c.b16 %v378, %v377
    %v389 = vpack.c.b16 %v380, %v379
    %v390 = vpack.c.b16 %v382, %v381
    %399 = vmatprep.subr.bf16.mxu0 0
    %400 = vmatpush1.bf16.msra.mxu0 %v383
    %401 = vmatprep.subr.bf16.mxu0 0
    %402 = vmatpush1.bf16.msra.mxu0 %v384
    %403 = vmatprep.subr.bf16.mxu0 0
    %404 = vmatpush1.bf16.msra.mxu0 %v385
    %405 = vmatprep.subr.bf16.mxu0 0
    %406 = vmatpush1.bf16.msra.mxu0 %v386
    %407 = vmatprep.subr.bf16.mxu0 0
    %408 = vmatpush1.bf16.msra.mxu0 %v387
    %409 = vmatprep.subr.bf16.mxu0 0
    %410 = vmatpush1.bf16.msra.mxu0 %v388
    %411 = vmatprep.subr.bf16.mxu0 0
    %412 = vmatpush1.bf16.msra.mxu0 %v389
    %413 = vmatprep.subr.bf16.mxu0 0
    %414 = vmatpush1.bf16.msra.mxu0 %v390
    %415 = vmatprep.subr.bf16.mxu0 0
    %416 = vmatpush1.bf16.msra.mxu0 0
    %417 = vmatprep.subr.bf16.mxu0 0
    %418 = vmatpush1.bf16.msra.mxu0 0
    %419 = vmatprep.subr.bf16.mxu0 0
    %420 = vmatpush1.bf16.msra.mxu0 0
    %421 = vmatprep.subr.bf16.mxu0 0
    %422 = vmatpush1.bf16.msra.mxu0 0
    %423 = vmatprep.subr.bf16.mxu0 0
    %424 = vmatpush1.bf16.msra.mxu0 0
    %425 = vmatprep.subr.bf16.mxu0 0
    %426 = vmatpush1.bf16.msra.mxu0 0
    %427 = vmatprep.subr.bf16.mxu0 0
    %428 = vmatpush1.bf16.msra.mxu0 0
    %429 = vmatprep.subr.bf16.mxu0 0
    %430 = vmatpush1.bf16.msra.mxu0 0
    %431 = vmatprep.mubr.bf16.mxu0 0
    %432 = vmatmul.mubr.bf16.gmra.mrb[0].mxu0 %v327
    %v433 = vpop.f32.mrb[0].mxu0
    %v434 = vadd.f32 %v349, %v433
    %v435 = vpop.f32.mrb[0].mxu0
    %v436 = vpop.f32.mrb[0].mxu0
    %v437 = vadd.f32 %v349, %v436
    %v438 = vpop.f32.mrb[0].mxu0
    %439 = vdwg.mxu0
    %440 = vst [vmem:[#allocation10] sm:$0xff] %v434
    %441 = vst [vmem:[#allocation10 + $0x8] sm:$0xff] %v437
    // Predicated region
    $region46: #{tpu_custom_call.1} parent=1 // pred_check
      _
    $region47: #{tpu_custom_call.1} parent=1 // pred_check_branch
      %443 = sbr.rel (0) target = $region49
    $region48: #{tpu_custom_call.1} parent=1 // pred_region
      %s445 = ssub.s32 256, 256
      %446 = vsyncadd [#allocation4], %s445
      %s447 = sshll.u32 [#allocation10], 4
      %s448 = int_to_ptr.vmem [resolvable:$true] %s447
      %453 = dma.vmem_to_hbm [thread:$0]  %s448, 256, %s7, [#allocation4], 128, 128, 8
    $region49: #{tpu_custom_call.1} parent=1 // pred_fallthru
      _
    // Predicated region
    $region50: #{tpu_custom_call.1} parent=1 // pred_check
      _
    $region51: #{tpu_custom_call.1} parent=1 // pred_check_branch
      %455 = sbr.rel (0) target = $region53
    $region52: #{tpu_custom_call.1} parent=1 // pred_region
      %456 = dma.done [#allocation4], 256
    $region53: #{tpu_custom_call.1} parent=1 // pred_fallthru
      _
    %457 = vsyncpa [#allocation3], 1
    %458 = vsyncpa [#allocation6], 1
    %459 = vsyncpa [#allocation9], 1
    %460 = vsyncpa [#allocation4], 1

</llo_original>
